<compile_context>
chip_gen: v7x
topology: tpu7x:2x2x1
jax: 0.10.0
libtpu: 0.0.40
codegen_flags: <defaults>
</compile_context>

<pallas_src>
import functools

import jax
import jax.numpy as jnp
from jax.experimental import pallas as pl
from jax.experimental.pallas import tpu as pltpu


def _round_up(x, m):
    return (x + m - 1) // m * m


# --------------------------------------------------------------------------- #
# Kernel
# --------------------------------------------------------------------------- #
def actor_kernel(x_ref,
                 w1_ref, b1_ref,
                 w2_ref, b2_ref,
                 w3_ref, b3_ref,
                 wh_ref, bh_ref,
                 mu_ref, sigma_ref):
    # x: [TB, K_PAD] f32. Weights bf16, biases f32. All matmuls accumulate in f32.
    x = x_ref[...]

    h = jnp.tanh(jnp.dot(x.astype(jnp.bfloat16), w1_ref[...],
                         preferred_element_type=jnp.float32) + b1_ref[...])
    h = jnp.tanh(jnp.dot(h.astype(jnp.bfloat16), w2_ref[...],
                         preferred_element_type=jnp.float32) + b2_ref[...])
    h = jnp.tanh(jnp.dot(h.astype(jnp.bfloat16), w3_ref[...],
                         preferred_element_type=jnp.float32) + b3_ref[...])

    # Fused heads: one MXU matmul producing [TB, 2*OUT_PAD]; split at the (128-
    # aligned) lane boundary. First half is mu, second half is the sigma
    # pre-activation (softplus applied here, in f32, stable form).
    z = jnp.dot(h.astype(jnp.bfloat16), wh_ref[...],
                preferred_element_type=jnp.float32) + bh_ref[...]

    out_pad = mu_ref.shape[-1]
    z_mu = z[:, :out_pad]
    z_sg = z[:, out_pad:]

    mu_ref[...] = z_mu.astype(mu_ref.dtype)
    sigma = jnp.log1p(jnp.exp(-jnp.abs(z_sg))) + jnp.maximum(z_sg, 0.0)
    sigma_ref[...] = sigma.astype(sigma_ref.dtype)


# --------------------------------------------------------------------------- #
# Wrapper
# --------------------------------------------------------------------------- #
def actor_forward(x, params, out_dim):
    """x: [B, in_dim] float32 -> (mu [B, out_dim], sigma [B, out_dim])."""
    B, in_dim = x.shape
    k_pad = params["w1"].shape[0]            # padded input width (multiple of 128)
    out_pad = params["whead"].shape[1] // 2  # per-head padded width (multiple of 128)

    # Batch tile: multiple of 256 (fills v6e/v7x 256x256 MXU) for large batches;
    # for small batches just round up to the sublane multiple (8) -> one grid step.
    if B > 256:
        tb = 256
    else:
        tb = max(8, _round_up(B, 8))
    b_pad = _round_up(B, tb)
    n_steps = b_pad // tb

    # Zero-pad batch rows and input-feature columns (K padding is folded into w1).
    x_p = jnp.pad(x.astype(jnp.float32), ((0, b_pad - B), (0, k_pad - in_dim)))

    # Weights/biases: full-array blocks with constant index maps -> resident in
    # VMEM across all grid steps (no per-step re-DMA).
    def _resident(arr):
        return pl.BlockSpec(arr.shape, lambda i: (0, 0))

    in_specs = [
        pl.BlockSpec((tb, k_pad), lambda i: (i, 0)),      # x tile (double-buffered)
        _resident(params["w1"]), _resident(params["b1"]),
        _resident(params["w2"]), _resident(params["b2"]),
        _resident(params["w3"]), _resident(params["b3"]),
        _resident(params["whead"]), _resident(params["bhead"]),
    ]
    out_specs = (pl.BlockSpec((tb, out_pad), lambda i: (i, 0)),
                 pl.BlockSpec((tb, out_pad), lambda i: (i, 0)))

    # Advisory cost estimate so XLA schedules/overlaps this small kernel sensibly.
    flops = 2 * b_pad * (k_pad * 512 + 512 * 256 + 256 * 256 + 256 * 2 * out_pad)
    transcendentals = b_pad * (512 + 256 + 256 + out_pad)
    weight_bytes = sum(int(params[k].size) * params[k].dtype.itemsize
                       for k in ("w1", "b1", "w2", "b2", "w3", "b3", "whead", "bhead"))
    bytes_accessed = weight_bytes + b_pad * (k_pad + 2 * out_pad) * 4
    cost = pl.CostEstimate(flops=flops,
                           transcendentals=transcendentals,
                           bytes_accessed=bytes_accessed)

    mu_pad, sg_pad = pl.pallas_call(
        actor_kernel,
        out_shape=(jax.ShapeDtypeStruct((b_pad, out_pad), jnp.float32),
                   jax.ShapeDtypeStruct((b_pad, out_pad), jnp.float32)),
        grid=(n_steps,),
        in_specs=in_specs,
        out_specs=out_specs,
        compiler_params=pltpu.CompilerParams(
            dimension_semantics=("parallel",)),   # v7x: shard batch over 2 TCs
        cost_estimate=cost,
    )(x_p,
      params["w1"], params["b1"],
      params["w2"], params["b2"],
      params["w3"], params["b3"],
      params["whead"], params["bhead"])

    # Slice padded rows / lanes back off.
    mu = mu_pad[:B, :out_dim]
    sigma = sg_pad[:B, :out_dim]
    return mu, sigma


# --------------------------------------------------------------------------- #
# Parameter init (mirrors PyTorch layer_init / default nn.Linear init)
# --------------------------------------------------------------------------- #
def _orthogonal_linear(key, in_f, out_f, std):
    # layer_init: orthogonal weight (gain=std), zero bias. Stored as [in, out].
    w = jax.nn.initializers.orthogonal(scale=std)(key, (out_f, in_f), jnp.float32)
    return w.T, jnp.zeros((1, out_f), jnp.float32)


def _default_linear(key, in_f, out_f):
    # PyTorch default nn.Linear init: U(-1/sqrt(in), 1/sqrt(in)).
    kw, kb = jax.random.split(key)
    bound = 1.0 / jnp.sqrt(jnp.float32(in_f))
    w = jax.random.uniform(kw, (in_f, out_f), jnp.float32, -bound, bound)
    b = jax.random.uniform(kb, (1, out_f), jnp.float32, -bound, bound)
    return w, b


def init_actor_params(key, in_dim, out_dim):
    k1, k2, k3, k4, k5 = jax.random.split(key, 5)
    std = float(jnp.sqrt(2.0))

    k_pad = max(128, _round_up(in_dim, 128))
    out_pad = max(128, _round_up(out_dim, 128))

    # fc layers (weights bf16, K padding folded into w1 with zero rows).
    w1, b1 = _orthogonal_linear(k1, in_dim, 512, std)
    w1 = jnp.pad(w1, ((0, k_pad - in_dim), (0, 0)))
    w2, b2 = _orthogonal_linear(k2, 512, 256, std)
    w3, b3 = _orthogonal_linear(k3, 256, 256, std)

    # Heads: mu (orthogonal std=0.01) and sigma (default init), each lane-padded
    # to out_pad, then fused into one [256, 2*out_pad] weight.
    wmu, bmu = _orthogonal_linear(k4, 256, out_dim, 0.01)
    wsg, bsg = _default_linear(k5, 256, out_dim)
    wmu = jnp.pad(wmu, ((0, 0), (0, out_pad - out_dim)))
    wsg = jnp.pad(wsg, ((0, 0), (0, out_pad - out_dim)))
    bmu = jnp.pad(bmu, ((0, 0), (0, out_pad - out_dim)))
    bsg = jnp.pad(bsg, ((0, 0), (0, out_pad - out_dim)))
    whead = jnp.concatenate([wmu, wsg], axis=1)
    bhead = jnp.concatenate([bmu, bsg], axis=1)

    bf16 = jnp.bfloat16
    return dict(
        w1=w1.astype(bf16), b1=b1,
        w2=w2.astype(bf16), b2=b2,
        w3=w3.astype(bf16), b3=b3,
        whead=whead.astype(bf16), bhead=bhead,
    )


# --------------------------------------------------------------------------- #
# Demo / correctness check
# --------------------------------------------------------------------------- #
if __name__ == "__main__":
    B, in_dim, out_dim = 2, 32, 8

    key = jax.random.PRNGKey(0)
    pkey, xkey = jax.random.split(key)
    params = init_actor_params(pkey, in_dim, out_dim)
    obs = jax.random.normal(xkey, (B, in_dim), jnp.float32)

    mu, sigma = actor_forward(obs, params, out_dim)
    jax.block_until_ready((mu, sigma))

    # Pure-JAX reference using the same (bf16-weight, f32-accumulate) numerics.
    def ref(x, p, odim):
        k_pad = p["w1"].shape[0]
        out_pad = p["whead"].shape[1] // 2
        xp = jnp.pad(x.astype(jnp.float32), ((0, 0), (0, k_pad - x.shape[1])))
        h = jnp.tanh(jnp.dot(xp.astype(jnp.bfloat16), p["w1"],
                             preferred_element_type=jnp.float32) + p["b1"])
        h = jnp.tanh(jnp.dot(h.astype(jnp.bfloat16), p["w2"],
                             preferred_element_type=jnp.float32) + p["b2"])
        h = jnp.tanh(jnp.dot(h.astype(jnp.bfloat16), p["w3"],
                             preferred_element_type=jnp.float32) + p["b3"])
        z = jnp.dot(h.astype(jnp.bfloat16), p["whead"],
                    preferred_element_type=jnp.float32) + p["bhead"]
        mu_r = z[:, :odim]
        sg_r = jax.nn.softplus(z[:, out_pad:out_pad + odim])
        return mu_r, sg_r

    mu_r, sg_r = ref(obs, params, out_dim)
    assert mu.shape == (B, out_dim) and sigma.shape == (B, out_dim)
    assert jnp.allclose(mu, mu_r, atol=1e-4, rtol=1e-4), "mu mismatch"
    assert jnp.allclose(sigma, sg_r, atol=1e-4, rtol=1e-4), "sigma mismatch"
    # softplus is >= 0 by construction; exact 0 only on extreme f32 underflow.
    assert bool(jnp.all(sigma >= 0.0)) and bool(jnp.all(jnp.isfinite(sigma)))

    print("KERNEL_OK")
</pallas_src>

<mosaic_0001>
module attributes {stable_mosaic.version = 11 : i64} {
  func.func @actor_kernel(%arg0: i32, %arg1: memref<8x128xf32, #tpu.memory_space<vmem>>, %arg2: memref<128x512xbf16, #tpu.memory_space<vmem>>, %arg3: memref<1x512xf32, #tpu.memory_space<vmem>>, %arg4: memref<512x256xbf16, #tpu.memory_space<vmem>>, %arg5: memref<1x256xf32, #tpu.memory_space<vmem>>, %arg6: memref<256x256xbf16, #tpu.memory_space<vmem>>, %arg7: memref<1x256xf32, #tpu.memory_space<vmem>>, %arg8: memref<256x256xbf16, #tpu.memory_space<vmem>>, %arg9: memref<1x256xf32, #tpu.memory_space<vmem>>, %arg10: memref<8x128xf32, #tpu.memory_space<vmem>>, %arg11: memref<8x128xf32, #tpu.memory_space<vmem>>) attributes {dimension_semantics = [#tpu.dimension_semantics<parallel>], iteration_bounds = array<i64: 1>, scalar_prefetch = 0 : i64, scratch_operands = 0 : i64, tpu.core_type = #tpu.core_type<tc>, window_params = [{transform_indices = @transform_0, window_bounds = array<i64: 8, 128>}, {pipeline_mode = #tpu.pipeline_mode<synchronous>, transform_indices = @transform_1, window_bounds = array<i64: 128, 512>}, {pipeline_mode = #tpu.pipeline_mode<synchronous>, transform_indices = @transform_2, window_bounds = array<i64: 1, 512>}, {pipeline_mode = #tpu.pipeline_mode<synchronous>, transform_indices = @transform_3, window_bounds = array<i64: 512, 256>}, {pipeline_mode = #tpu.pipeline_mode<synchronous>, transform_indices = @transform_4, window_bounds = array<i64: 1, 256>}, {pipeline_mode = #tpu.pipeline_mode<synchronous>, transform_indices = @transform_5, window_bounds = array<i64: 256, 256>}, {pipeline_mode = #tpu.pipeline_mode<synchronous>, transform_indices = @transform_6, window_bounds = array<i64: 1, 256>}, {pipeline_mode = #tpu.pipeline_mode<synchronous>, transform_indices = @transform_7, window_bounds = array<i64: 256, 256>}, {pipeline_mode = #tpu.pipeline_mode<synchronous>, transform_indices = @transform_8, window_bounds = array<i64: 1, 256>}, {transform_indices = @transform_9, window_bounds = array<i64: 8, 128>}, {transform_indices = @transform_10, window_bounds = array<i64: 8, 128>}]} {
    %c0 = arith.constant 0 : index
    %c0_0 = arith.constant 0 : index
    %0 = vector.load %arg1[%c0, %c0_0] : memref<8x128xf32, #tpu.memory_space<vmem>>, vector<8x128xf32>
    %1 = arith.truncf %0 : vector<8x128xf32> to vector<8x128xbf16>
    %c0_1 = arith.constant 0 : index
    %c0_2 = arith.constant 0 : index
    %2 = vector.load %arg2[%c0_1, %c0_2] : memref<128x512xbf16, #tpu.memory_space<vmem>>, vector<128x512xbf16>
    %cst = arith.constant dense<0.000000e+00> : vector<8x512xf32>
    %3 = tpu.matmul %1, %2, %cst {dimension_numbers = #tpu.dot_dimension_numbers<[1], [0], [0], [1], [0, 0, 1, 1], [], []>} : vector<8x128xbf16>, vector<128x512xbf16>, vector<8x512xf32> -> vector<8x512xf32>
    %c0_3 = arith.constant 0 : index
    %c0_4 = arith.constant 0 : index
    %4 = vector.load %arg3[%c0_3, %c0_4] : memref<1x512xf32, #tpu.memory_space<vmem>>, vector<1x512xf32>
    %5 = vector.broadcast %4 : vector<1x512xf32> to vector<8x512xf32>
    %6 = arith.addf %3, %5 : vector<8x512xf32>
    %7 = math.tanh %6 : vector<8x512xf32>
    %8 = arith.truncf %7 : vector<8x512xf32> to vector<8x512xbf16>
    %c0_5 = arith.constant 0 : index
    %c0_6 = arith.constant 0 : index
    %9 = vector.load %arg4[%c0_5, %c0_6] : memref<512x256xbf16, #tpu.memory_space<vmem>>, vector<512x256xbf16>
    %cst_7 = arith.constant dense<0.000000e+00> : vector<8x256xf32>
    %10 = tpu.matmul %8, %9, %cst_7 {dimension_numbers = #tpu.dot_dimension_numbers<[1], [0], [0], [1], [0, 0, 1, 1], [], []>} : vector<8x512xbf16>, vector<512x256xbf16>, vector<8x256xf32> -> vector<8x256xf32>
    %c0_8 = arith.constant 0 : index
    %c0_9 = arith.constant 0 : index
    %11 = vector.load %arg5[%c0_8, %c0_9] : memref<1x256xf32, #tpu.memory_space<vmem>>, vector<1x256xf32>
    %12 = vector.broadcast %11 : vector<1x256xf32> to vector<8x256xf32>
    %13 = arith.addf %10, %12 : vector<8x256xf32>
    %14 = math.tanh %13 : vector<8x256xf32>
    %15 = arith.truncf %14 : vector<8x256xf32> to vector<8x256xbf16>
    %c0_10 = arith.constant 0 : index
    %c0_11 = arith.constant 0 : index
    %16 = vector.load %arg6[%c0_10, %c0_11] : memref<256x256xbf16, #tpu.memory_space<vmem>>, vector<256x256xbf16>
    %cst_12 = arith.constant dense<0.000000e+00> : vector<8x256xf32>
    %17 = tpu.matmul %15, %16, %cst_12 {dimension_numbers = #tpu.dot_dimension_numbers<[1], [0], [0], [1], [0, 0, 1, 1], [], []>} : vector<8x256xbf16>, vector<256x256xbf16>, vector<8x256xf32> -> vector<8x256xf32>
    %c0_13 = arith.constant 0 : index
    %c0_14 = arith.constant 0 : index
    %18 = vector.load %arg7[%c0_13, %c0_14] : memref<1x256xf32, #tpu.memory_space<vmem>>, vector<1x256xf32>
    %19 = vector.broadcast %18 : vector<1x256xf32> to vector<8x256xf32>
    %20 = arith.addf %17, %19 : vector<8x256xf32>
    %21 = math.tanh %20 : vector<8x256xf32>
    %22 = arith.truncf %21 : vector<8x256xf32> to vector<8x256xbf16>
    %c0_15 = arith.constant 0 : index
    %c0_16 = arith.constant 0 : index
    %23 = vector.load %arg8[%c0_15, %c0_16] : memref<256x256xbf16, #tpu.memory_space<vmem>>, vector<256x256xbf16>
    %cst_17 = arith.constant dense<0.000000e+00> : vector<8x256xf32>
    %24 = tpu.matmul %22, %23, %cst_17 {dimension_numbers = #tpu.dot_dimension_numbers<[1], [0], [0], [1], [0, 0, 1, 1], [], []>} : vector<8x256xbf16>, vector<256x256xbf16>, vector<8x256xf32> -> vector<8x256xf32>
    %c0_18 = arith.constant 0 : index
    %c0_19 = arith.constant 0 : index
    %25 = vector.load %arg9[%c0_18, %c0_19] : memref<1x256xf32, #tpu.memory_space<vmem>>, vector<1x256xf32>
    %26 = vector.broadcast %25 : vector<1x256xf32> to vector<8x256xf32>
    %27 = arith.addf %24, %26 : vector<8x256xf32>
    %28 = vector.extract_strided_slice %27 {offsets = [0, 0], sizes = [8, 128], strides = [1, 1]} : vector<8x256xf32> to vector<8x128xf32>
    %29 = vector.extract_strided_slice %27 {offsets = [0, 128], sizes = [8, 128], strides = [1, 1]} : vector<8x256xf32> to vector<8x128xf32>
    %c0_20 = arith.constant 0 : index
    %c0_21 = arith.constant 0 : index
    %30 = vector.load %arg10[%c0_20, %c0_21] : memref<8x128xf32, #tpu.memory_space<vmem>>, vector<8x128xf32>
    tpu.vector_store %arg10[%c0_20, %c0_21], %28 {strides = array<i32>} : memref<8x128xf32, #tpu.memory_space<vmem>>, vector<8x128xf32>,
    %31 = math.absf %29 : vector<8x128xf32>
    %cst_22 = arith.constant 0.000000e+00 : f32
    %32 = vector.broadcast %cst_22 : f32 to vector<8x128xf32>
    %33 = arith.subf %32, %31 : vector<8x128xf32>
    %34 = math.exp %33 : vector<8x128xf32>
    %35 = math.log1p %34 : vector<8x128xf32>
    %cst_23 = arith.constant 0.000000e+00 : f32
    %36 = vector.broadcast %cst_23 : f32 to vector<8x128xf32>
    %37 = arith.maximumf %29, %36 : vector<8x128xf32>
    %38 = arith.addf %35, %37 : vector<8x128xf32>
    %c0_24 = arith.constant 0 : index
    %c0_25 = arith.constant 0 : index
    %39 = vector.load %arg11[%c0_24, %c0_25] : memref<8x128xf32, #tpu.memory_space<vmem>>, vector<8x128xf32>
    tpu.vector_store %arg11[%c0_24, %c0_25], %38 {strides = array<i32>} : memref<8x128xf32, #tpu.memory_space<vmem>>, vector<8x128xf32>,
    return
  }
  func.func @transform_0(%arg0: i32) -> (i32, i32) {
    %c0_i32 = arith.constant 0 : i32
    %c0_i32_0 = arith.constant 0 : i32
    return %arg0, %c0_i32 : i32, i32
  }
  func.func @transform_1(%arg0: i32) -> (i32, i32) {
    %c0_i32 = arith.constant 0 : i32
    %c0_i32_0 = arith.constant 0 : i32
    %c0_i32_1 = arith.constant 0 : i32
    return %c0_i32, %c0_i32_0 : i32, i32
  }
  func.func @transform_2(%arg0: i32) -> (i32, i32) {
    %c0_i32 = arith.constant 0 : i32
    %c0_i32_0 = arith.constant 0 : i32
    %c0_i32_1 = arith.constant 0 : i32
    return %c0_i32, %c0_i32_0 : i32, i32
  }
  func.func @transform_3(%arg0: i32) -> (i32, i32) {
    %c0_i32 = arith.constant 0 : i32
    %c0_i32_0 = arith.constant 0 : i32
    %c0_i32_1 = arith.constant 0 : i32
    return %c0_i32, %c0_i32_0 : i32, i32
  }
  func.func @transform_4(%arg0: i32) -> (i32, i32) {
    %c0_i32 = arith.constant 0 : i32
    %c0_i32_0 = arith.constant 0 : i32
    %c0_i32_1 = arith.constant 0 : i32
    return %c0_i32, %c0_i32_0 : i32, i32
  }
  func.func @transform_5(%arg0: i32) -> (i32, i32) {
    %c0_i32 = arith.constant 0 : i32
    %c0_i32_0 = arith.constant 0 : i32
    %c0_i32_1 = arith.constant 0 : i32
    return %c0_i32, %c0_i32_0 : i32, i32
  }
  func.func @transform_6(%arg0: i32) -> (i32, i32) {
    %c0_i32 = arith.constant 0 : i32
    %c0_i32_0 = arith.constant 0 : i32
    %c0_i32_1 = arith.constant 0 : i32
    return %c0_i32, %c0_i32_0 : i32, i32
  }
  func.func @transform_7(%arg0: i32) -> (i32, i32) {
    %c0_i32 = arith.constant 0 : i32
    %c0_i32_0 = arith.constant 0 : i32
    %c0_i32_1 = arith.constant 0 : i32
    return %c0_i32, %c0_i32_0 : i32, i32
  }
  func.func @transform_8(%arg0: i32) -> (i32, i32) {
    %c0_i32 = arith.constant 0 : i32
    %c0_i32_0 = arith.constant 0 : i32
    %c0_i32_1 = arith.constant 0 : i32
    return %c0_i32, %c0_i32_0 : i32, i32
  }
  func.func @transform_9(%arg0: i32) -> (i32, i32) {
    %c0_i32 = arith.constant 0 : i32
    %c0_i32_0 = arith.constant 0 : i32
    return %arg0, %c0_i32 : i32, i32
  }
  func.func @transform_10(%arg0: i32) -> (i32, i32) {
    %c0_i32 = arith.constant 0 : i32
    %c0_i32_0 = arith.constant 0 : i32
    return %arg0, %c0_i32 : i32, i32
  }
}

</mosaic_0001>

<llo_original>
// kernel: tpu_custom_call.1
$region0: #{tpu_custom_call.1}
  #allocation0 [shape = 'u32[]', space=smem, size = 0x4, offset = 0x4, fixed_abs, tag = 'smem constant byte address 0x4 - core index']
  #allocation1 [shape = 'u32[144,128]{1,0:T(1,128)}', space=vmem, size = 0x12000, scoped, tag = 'internal scratch']
  %s0 = inlined_call_operand.hbm [shape: f32[8,128], index: 0, kind: input, shape index: {}]
  %s1 = inlined_call_operand.hbm [shape: bf16[128,512], index: 1, kind: input, shape index: {}]
  %s2 = inlined_call_operand.vmem [shape: f32[1,512], index: 2, kind: input, shape index: {}]
  %s3 = inlined_call_operand.hbm [shape: bf16[512,256], index: 3, kind: input, shape index: {}]
  %s4 = inlined_call_operand.vmem [shape: f32[1,256], index: 4, kind: input, shape index: {}]
  %s5 = inlined_call_operand.hbm [shape: bf16[256,256], index: 5, kind: input, shape index: {}]
  %s6 = inlined_call_operand.vmem [shape: f32[1,256], index: 6, kind: input, shape index: {}]
  %s7 = inlined_call_operand.hbm [shape: bf16[256,256], index: 7, kind: input, shape index: {}]
  %s8 = inlined_call_operand.vmem [shape: f32[1,256], index: 8, kind: input, shape index: {}]
  %s9 = inlined_call_operand.hbm [shape: f32[8,128], index: 9, kind: output, shape index: {0}]
  %s10 = inlined_call_operand.hbm [shape: f32[8,128], index: 10, kind: output, shape index: {1}]
  %11 = xla_tuple %s9, %s10
  %s12 = sld [smem:[#allocation0]]
  $region74: #{tpu_custom_call.1} parent=0
    _
  %s14 = ssub.s32 1, %s12
  %s15 = scalar_select 0, %s14, %s12
  $region1: #{tpu_custom_call.1} parent=0
    #allocation2 [shape = 'u8[4096]{0}', space=vmem, size = 0x1000, scoped, tag = 'input window, operand 0, single buffered']
    #allocation3 [shape = 's32[1]{0}', space=sflag, size = 0x4, scoped, tag = 'scoped memory for tpu_custom_call.1']
    #allocation4 [shape = 's32[1]{0}', space=sflag, size = 0x4, scoped, tag = 'scoped memory for tpu_custom_call.1']
    #allocation5 [shape = 'u8[131072]{0}', space=vmem, size = 0x20000, scoped, tag = 'input window, operand 1, single buffered']
    #allocation6 [shape = 's32[1]{0}', space=sflag, size = 0x4, scoped, tag = 'scoped memory for tpu_custom_call.1']
    #allocation7 [shape = 'u8[262144]{0}', space=vmem, size = 0x40000, scoped, tag = 'input window, operand 3, single buffered']
    #allocation8 [shape = 'u8[131072]{0}', space=vmem, size = 0x20000, scoped, tag = 'input window, operand 5, single buffered']
    #allocation9 [shape = 's32[1]{0}', space=sflag, size = 0x4, scoped, tag = 'scoped memory for tpu_custom_call.1']
    #allocation10 [shape = 'u8[131072]{0}', space=vmem, size = 0x20000, scoped, tag = 'input window, operand 7, single buffered']
    #allocation11 [shape = 'u8[4096]{0}', space=vmem, size = 0x1000, scoped, tag = 'output window, operand 0, single buffered']
    #allocation12 [shape = 'u8[4096]{0}', space=vmem, size = 0x1000, scoped, tag = 'output window, operand 1, single buffered']
    #allocation13 [shape = 's32[1]{0}', space=sflag, size = 0x4, scoped, tag = 'scoped memory for tpu_custom_call.1']
    %16 = vsyncpa [#allocation3], 0
    %17 = vsyncpa [#allocation6], 0
    %18 = vsyncpa [#allocation9], 0
    %19 = vsyncpa [#allocation4], 0
    %20 = vsyncpa [#allocation13], 0
    // Predicated region
    $region2: #{tpu_custom_call.1} parent=1 // pred_check
      _
    $region3: #{tpu_custom_call.1} parent=1 // pred_check_branch
      %22 = sbr.rel (0) target = $region5
    $region4: #{tpu_custom_call.1} parent=1 // pred_region
      %s24 = ssub.s32 128, 128
      %25 = vsyncadd [#allocation3], %s24
      %s27 = sshll.u32 [#allocation2], 4
      %s28 = int_to_ptr.vmem [resolvable:$true] %s27
      %30 = dma.hbm_to_vmem [thread:$0]  %s0, 128, %s28, [#allocation3]
    $region5: #{tpu_custom_call.1} parent=1 // pred_fallthru
      _
    // Predicated region
    $region6: #{tpu_custom_call.1} parent=1 // pred_check
      _
    $region7: #{tpu_custom_call.1} parent=1 // pred_check_branch
      %32 = sbr.rel (0) target = $region9
    $region8: #{tpu_custom_call.1} parent=1 // pred_region
      %s34 = ssub.s32 4096, 4096
      %35 = vsyncadd [#allocation6], %s34
      %s36 = sshll.u32 [#allocation5], 4
      %s37 = int_to_ptr.vmem [resolvable:$true] %s36
      %42 = dma.hbm_to_vmem [thread:$0]  %s1, 4096, %s37, [#allocation6], 256, 256, 16
    $region9: #{tpu_custom_call.1} parent=1 // pred_fallthru
      _
    // Predicated region
    $region10: #{tpu_custom_call.1} parent=1 // pred_check
      _
    $region11: #{tpu_custom_call.1} parent=1 // pred_check_branch
      %44 = sbr.rel (0) target = $region13
    $region12: #{tpu_custom_call.1} parent=1 // pred_region
      _
    $region13: #{tpu_custom_call.1} parent=1 // pred_fallthru
      _
    // Predicated region
    $region14: #{tpu_custom_call.1} parent=1 // pred_check
      _
    $region15: #{tpu_custom_call.1} parent=1 // pred_check_branch
      %46 = sbr.rel (0) target = $region17
    $region16: #{tpu_custom_call.1} parent=1 // pred_region
      %s48 = ssub.s32 8192, 8192
      %49 = vsyncadd [#allocation6], %s48
      %s50 = sshll.u32 [#allocation7], 4
      %s51 = int_to_ptr.vmem [resolvable:$true] %s50
      %56 = dma.hbm_to_vmem [thread:$0]  %s3, 8192, %s51, [#allocation6], 128, 128, 8
    $region17: #{tpu_custom_call.1} parent=1 // pred_fallthru
      _
    // Predicated region
    $region18: #{tpu_custom_call.1} parent=1 // pred_check
      _
    $region19: #{tpu_custom_call.1} parent=1 // pred_check_branch
      %58 = sbr.rel (0) target = $region21
    $region20: #{tpu_custom_call.1} parent=1 // pred_region
      _
    $region21: #{tpu_custom_call.1} parent=1 // pred_fallthru
      _
    // Predicated region
    $region22: #{tpu_custom_call.1} parent=1 // pred_check
      _
    $region23: #{tpu_custom_call.1} parent=1 // pred_check_branch
      %60 = sbr.rel (0) target = $region25
    $region24: #{tpu_custom_call.1} parent=1 // pred_region
      %s62 = ssub.s32 4096, 4096
      %63 = vsyncadd [#allocation9], %s62
      %s64 = sshll.u32 [#allocation8], 4
      %s65 = int_to_ptr.vmem [resolvable:$true] %s64
      %70 = dma.hbm_to_vmem [thread:$0]  %s5, 4096, %s65, [#allocation9], 128, 128, 8
    $region25: #{tpu_custom_call.1} parent=1 // pred_fallthru
      _
    // Predicated region
    $region26: #{tpu_custom_call.1} parent=1 // pred_check
      _
    $region27: #{tpu_custom_call.1} parent=1 // pred_check_branch
      %72 = sbr.rel (0) target = $region29
    $region28: #{tpu_custom_call.1} parent=1 // pred_region
      _
    $region29: #{tpu_custom_call.1} parent=1 // pred_fallthru
      _
    // Predicated region
    $region30: #{tpu_custom_call.1} parent=1 // pred_check
      _
    $region31: #{tpu_custom_call.1} parent=1 // pred_check_branch
      %74 = sbr.rel (0) target = $region33
    $region32: #{tpu_custom_call.1} parent=1 // pred_region
      %s76 = ssub.s32 4096, 4096
      %77 = vsyncadd [#allocation9], %s76
      %s78 = sshll.u32 [#allocation10], 4
      %s79 = int_to_ptr.vmem [resolvable:$true] %s78
      %84 = dma.hbm_to_vmem [thread:$0]  %s7, 4096, %s79, [#allocation9], 128, 128, 8
    $region33: #{tpu_custom_call.1} parent=1 // pred_fallthru
      _
    // Predicated region
    $region34: #{tpu_custom_call.1} parent=1 // pred_check
      _
    $region35: #{tpu_custom_call.1} parent=1 // pred_check_branch
      %86 = sbr.rel (0) target = $region37
    $region36: #{tpu_custom_call.1} parent=1 // pred_region
      _
    $region37: #{tpu_custom_call.1} parent=1 // pred_fallthru
      _
    // Predicated region
    $region38: #{tpu_custom_call.1} parent=1 // pred_check
      _
    $region39: #{tpu_custom_call.1} parent=1 // pred_check_branch
      %88 = sbr.rel (0) target = $region41
    $region40: #{tpu_custom_call.1} parent=1 // pred_region
      %89 = dma.done [#allocation3], 128
    $region41: #{tpu_custom_call.1} parent=1 // pred_fallthru
      _
    // Predicated region
    $region42: #{tpu_custom_call.1} parent=1 // pred_check
      _
    $region43: #{tpu_custom_call.1} parent=1 // pred_check_branch
      %91 = sbr.rel (0) target = $region45
    $region44: #{tpu_custom_call.1} parent=1 // pred_region
      %92 = dma.done [#allocation6], 4096
    $region45: #{tpu_custom_call.1} parent=1 // pred_fallthru
      _
    // Predicated region
    $region46: #{tpu_custom_call.1} parent=1 // pred_check
      _
    $region47: #{tpu_custom_call.1} parent=1 // pred_check_branch
      %94 = sbr.rel (0) target = $region49
    $region48: #{tpu_custom_call.1} parent=1 // pred_region
      %95 = dma.done [#allocation6], 8192
    $region49: #{tpu_custom_call.1} parent=1 // pred_fallthru
      _
    // Predicated region
    $region50: #{tpu_custom_call.1} parent=1 // pred_check
      _
    $region51: #{tpu_custom_call.1} parent=1 // pred_check_branch
      %97 = sbr.rel (0) target = $region53
    $region52: #{tpu_custom_call.1} parent=1 // pred_region
      %98 = dma.done [#allocation9], 4096
    $region53: #{tpu_custom_call.1} parent=1 // pred_fallthru
      _
    // Predicated region
    $region54: #{tpu_custom_call.1} parent=1 // pred_check
      _
    $region55: #{tpu_custom_call.1} parent=1 // pred_check_branch
      %100 = sbr.rel (0) target = $region57
    $region56: #{tpu_custom_call.1} parent=1 // pred_region
      %101 = dma.done [#allocation9], 4096
    $region57: #{tpu_custom_call.1} parent=1 // pred_fallthru
      _
    %v103 = vld [vmem:[#allocation2] sm:$0xff]
    %v104 = vpack.c.bf16 %v103, %v103
    %v105 = vld [vmem:[#allocation5] sm:$0xff]
    %v106 = vld [vmem:[#allocation5 + $0x8] sm:$0xff]
    %v107 = vld [vmem:[#allocation5 + $0x10] sm:$0xff]
    %v108 = vld [vmem:[#allocation5 + $0x18] sm:$0xff]
    %v109 = vld [vmem:[#allocation5 + $0x20] sm:$0xff]
    %v110 = vld [vmem:[#allocation5 + $0x28] sm:$0xff]
    %v111 = vld [vmem:[#allocation5 + $0x30] sm:$0xff]
    %v112 = vld [vmem:[#allocation5 + $0x38] sm:$0xff]
    %v113 = vld [vmem:[#allocation5 + $0x40] sm:$0xff]
    %v114 = vld [vmem:[#allocation5 + $0x48] sm:$0xff]
    %v115 = vld [vmem:[#allocation5 + $0x50] sm:$0xff]
    %v116 = vld [vmem:[#allocation5 + $0x58] sm:$0xff]
    %v117 = vld [vmem:[#allocation5 + $0x60] sm:$0xff]
    %v118 = vld [vmem:[#allocation5 + $0x68] sm:$0xff]
    %v119 = vld [vmem:[#allocation5 + $0x70] sm:$0xff]
    %v120 = vld [vmem:[#allocation5 + $0x78] sm:$0xff]
    %v121 = vld [vmem:[#allocation5 + $0x80] sm:$0xff]
    %v122 = vld [vmem:[#allocation5 + $0x88] sm:$0xff]
    %v123 = vld [vmem:[#allocation5 + $0x90] sm:$0xff]
    %v124 = vld [vmem:[#allocation5 + $0x98] sm:$0xff]
    %v125 = vld [vmem:[#allocation5 + $0xa0] sm:$0xff]
    %v126 = vld [vmem:[#allocation5 + $0xa8] sm:$0xff]
    %v127 = vld [vmem:[#allocation5 + $0xb0] sm:$0xff]
    %v128 = vld [vmem:[#allocation5 + $0xb8] sm:$0xff]
    %v129 = vld [vmem:[#allocation5 + $0xc0] sm:$0xff]
    %v130 = vld [vmem:[#allocation5 + $0xc8] sm:$0xff]
    %v131 = vld [vmem:[#allocation5 + $0xd0] sm:$0xff]
    %v132 = vld [vmem:[#allocation5 + $0xd8] sm:$0xff]
    %v133 = vld [vmem:[#allocation5 + $0xe0] sm:$0xff]
    %v134 = vld [vmem:[#allocation5 + $0xe8] sm:$0xff]
    %v135 = vld [vmem:[#allocation5 + $0xf0] sm:$0xff]
    %v136 = vld [vmem:[#allocation5 + $0xf8] sm:$0xff]
    %v137 = vld [vmem:[%s2] sm:$0xf]
    %v139 = vlaneseq
    %v140 = vshrl.u32 %v139, 7
    %v141 = vsub.s32 0, %v140
    %v142 = vrot.slane %v137, %v141
    %v143 = vlaneseq
    %v144 = vshrl.u32 %v143, 7
    %v145 = vsub.s32 1, %v144
    %v146 = vrot.slane %v137, %v145
    %v147 = vlaneseq
    %v148 = vshrl.u32 %v147, 7
    %v149 = vsub.s32 2, %v148
    %v150 = vrot.slane %v137, %v149
    %v151 = vlaneseq
    %v152 = vshrl.u32 %v151, 7
    %v153 = vsub.s32 3, %v152
    %v154 = vrot.slane %v137, %v153
    %v191 = vunpack.c.l.b16 %v105
    %v192 = vunpack.c.h.b16 %v105
    %v193 = vunpack.c.l.b16 %v106
    %v194 = vunpack.c.h.b16 %v106
    %v195 = vunpack.c.l.b16 %v107
    %v196 = vunpack.c.h.b16 %v107
    %v197 = vunpack.c.l.b16 %v108
    %v198 = vunpack.c.h.b16 %v108
    %v199 = vunpack.c.l.b16 %v109
    %v200 = vunpack.c.h.b16 %v109
    %v201 = vunpack.c.l.b16 %v110
    %v202 = vunpack.c.h.b16 %v110
    %v203 = vunpack.c.l.b16 %v111
    %v204 = vunpack.c.h.b16 %v111
    %v205 = vunpack.c.l.b16 %v112
    %v206 = vunpack.c.h.b16 %v112
    %v207 = vunpack.c.l.b16 %v113
    %v208 = vunpack.c.h.b16 %v113
    %v209 = vunpack.c.l.b16 %v114
    %v210 = vunpack.c.h.b16 %v114
    %v211 = vunpack.c.l.b16 %v115
    %v212 = vunpack.c.h.b16 %v115
    %v213 = vunpack.c.l.b16 %v116
    %v214 = vunpack.c.h.b16 %v116
    %v215 = vunpack.c.l.b16 %v117
    %v216 = vunpack.c.h.b16 %v117
    %v217 = vunpack.c.l.b16 %v118
    %v218 = vunpack.c.h.b16 %v118
    %v219 = vunpack.c.l.b16 %v119
    %v220 = vunpack.c.h.b16 %v119
    %v221 = vunpack.c.l.b16 %v120
    %v222 = vunpack.c.h.b16 %v120
    %v223 = vunpack.c.l.b16 %v121
    %v224 = vunpack.c.h.b16 %v121
    %v225 = vunpack.c.l.b16 %v122
    %v226 = vunpack.c.h.b16 %v122
    %v227 = vunpack.c.l.b16 %v123
    %v228 = vunpack.c.h.b16 %v123
    %v229 = vunpack.c.l.b16 %v124
    %v230 = vunpack.c.h.b16 %v124
    %v231 = vunpack.c.l.b16 %v125
    %v232 = vunpack.c.h.b16 %v125
    %v233 = vunpack.c.l.b16 %v126
    %v234 = vunpack.c.h.b16 %v126
    %v235 = vunpack.c.l.b16 %v127
    %v236 = vunpack.c.h.b16 %v127
    %v237 = vunpack.c.l.b16 %v128
    %v238 = vunpack.c.h.b16 %v128
    %v239 = vunpack.c.l.b16 %v129
    %v240 = vunpack.c.h.b16 %v129
    %v241 = vunpack.c.l.b16 %v130
    %v242 = vunpack.c.h.b16 %v130
    %v243 = vunpack.c.l.b16 %v131
    %v244 = vunpack.c.h.b16 %v131
    %v245 = vunpack.c.l.b16 %v132
    %v246 = vunpack.c.h.b16 %v132
    %v247 = vunpack.c.l.b16 %v133
    %v248 = vunpack.c.h.b16 %v133
    %v249 = vunpack.c.l.b16 %v134
    %v250 = vunpack.c.h.b16 %v134
    %v251 = vunpack.c.l.b16 %v135
    %v252 = vunpack.c.h.b16 %v135
    %v253 = vunpack.c.l.b16 %v136
    %v254 = vunpack.c.h.b16 %v136
    %v255 = vpack.c.b16 %v195, %v191
    %v256 = vpack.c.b16 %v196, %v192
    %v257 = vpack.c.b16 %v197, %v193
    %v258 = vpack.c.b16 %v198, %v194
    %v259 = vpack.c.b16 %v203, %v199
    %v260 = vpack.c.b16 %v204, %v200
    %v261 = vpack.c.b16 %v205, %v201
    %v262 = vpack.c.b16 %v206, %v202
    %v263 = vpack.c.b16 %v211, %v207
    %v264 = vpack.c.b16 %v212, %v208
    %v265 = vpack.c.b16 %v213, %v209
    %v266 = vpack.c.b16 %v214, %v210
    %v267 = vpack.c.b16 %v219, %v215
    %v268 = vpack.c.b16 %v220, %v216
    %v269 = vpack.c.b16 %v221, %v217
    %v270 = vpack.c.b16 %v222, %v218
    %v271 = vpack.c.b16 %v227, %v223
    %v272 = vpack.c.b16 %v228, %v224
    %v273 = vpack.c.b16 %v229, %v225
    %v274 = vpack.c.b16 %v230, %v226
    %v275 = vpack.c.b16 %v235, %v231
    %v276 = vpack.c.b16 %v236, %v232
    %v277 = vpack.c.b16 %v237, %v233
    %v278 = vpack.c.b16 %v238, %v234
    %v279 = vpack.c.b16 %v243, %v239
    %v280 = vpack.c.b16 %v244, %v240
    %v281 = vpack.c.b16 %v245, %v241
    %v282 = vpack.c.b16 %v246, %v242
    %v283 = vpack.c.b16 %v251, %v247
    %v284 = vpack.c.b16 %v252, %v248
    %v285 = vpack.c.b16 %v253, %v249
    %v286 = vpack.c.b16 %v254, %v250
    %319 = vmatprep.subr.bf16.mxu0 %v256
    %320 = vmatpush1.bf16.msra.mxu0 %v255
    %321 = vmatprep.subr.bf16.mxu0 %v260
    %322 = vmatpush1.bf16.msra.mxu0 %v259
    %323 = vmatprep.subr.bf16.mxu0 %v264
    %324 = vmatpush1.bf16.msra.mxu0 %v263
    %325 = vmatprep.subr.bf16.mxu0 %v268
    %326 = vmatpush1.bf16.msra.mxu0 %v267
    %327 = vmatprep.subr.bf16.mxu0 %v272
    %328 = vmatpush1.bf16.msra.mxu0 %v271
    %329 = vmatprep.subr.bf16.mxu0 %v276
    %330 = vmatpush1.bf16.msra.mxu0 %v275
    %331 = vmatprep.subr.bf16.mxu0 %v280
    %332 = vmatpush1.bf16.msra.mxu0 %v279
    %333 = vmatprep.subr.bf16.mxu0 %v284
    %334 = vmatpush1.bf16.msra.mxu0 %v283
    %335 = vmatprep.subr.bf16.mxu0 0
    %336 = vmatpush1.bf16.msra.mxu0 0
    %337 = vmatprep.subr.bf16.mxu0 0
    %338 = vmatpush1.bf16.msra.mxu0 0
    %339 = vmatprep.subr.bf16.mxu0 0
    %340 = vmatpush1.bf16.msra.mxu0 0
    %341 = vmatprep.subr.bf16.mxu0 0
    %342 = vmatpush1.bf16.msra.mxu0 0
    %343 = vmatprep.subr.bf16.mxu0 0
    %344 = vmatpush1.bf16.msra.mxu0 0
    %345 = vmatprep.subr.bf16.mxu0 0
    %346 = vmatpush1.bf16.msra.mxu0 0
    %347 = vmatprep.subr.bf16.mxu0 0
    %348 = vmatpush1.bf16.msra.mxu0 0
    %349 = vmatprep.subr.bf16.mxu0 0
    %350 = vmatpush1.bf16.msra.mxu0 0
    %351 = vmatprep.mubr.bf16.mxu0 0
    %352 = vmatmul.mubr.bf16.gmra.mrb[0].mxu0 %v104
    %v353 = vpop.f32.mrb[0].mxu0
    %v354 = vadd.f32 %v142, %v353
    %v355 = vpop.f32.mrb[0].mxu0
    %v356 = vadd.f32 %v146, %v355
    %v357 = vpop.f32.mrb[0].mxu0
    %v358 = vpop.f32.mrb[0].mxu0
    %359 = vdwg.mxu0
    %360 = vmatprep.subr.bf16.mxu0 %v258
    %361 = vmatpush1.bf16.msra.mxu0 %v257
    %362 = vmatprep.subr.bf16.mxu0 %v262
    %363 = vmatpush1.bf16.msra.mxu0 %v261
    %364 = vmatprep.subr.bf16.mxu0 %v266
    %365 = vmatpush1.bf16.msra.mxu0 %v265
    %366 = vmatprep.subr.bf16.mxu0 %v270
    %367 = vmatpush1.bf16.msra.mxu0 %v269
    %368 = vmatprep.subr.bf16.mxu0 %v274
    %369 = vmatpush1.bf16.msra.mxu0 %v273
    %370 = vmatprep.subr.bf16.mxu0 %v278
    %371 = vmatpush1.bf16.msra.mxu0 %v277
    %372 = vmatprep.subr.bf16.mxu0 %v282
    %373 = vmatpush1.bf16.msra.mxu0 %v281
    %374 = vmatprep.subr.bf16.mxu0 %v286
    %375 = vmatpush1.bf16.msra.mxu0 %v285
    %376 = vmatprep.subr.bf16.mxu0 0
    %377 = vmatpush1.bf16.msra.mxu0 0
    %378 = vmatprep.subr.bf16.mxu0 0
    %379 = vmatpush1.bf16.msra.mxu0 0
    %380 = vmatprep.subr.bf16.mxu0 0
    %381 = vmatpush1.bf16.msra.mxu0 0
    %382 = vmatprep.subr.bf16.mxu0 0
    %383 = vmatpush1.bf16.msra.mxu0 0
    %384 = vmatprep.subr.bf16.mxu0 0
    %385 = vmatpush1.bf16.msra.mxu0 0
    %386 = vmatprep.subr.bf16.mxu0 0
    %387 = vmatpush1.bf16.msra.mxu0 0
    %388 = vmatprep.subr.bf16.mxu0 0
    %389 = vmatpush1.bf16.msra.mxu0 0
    %390 = vmatprep.subr.bf16.mxu0 0
    %391 = vmatpush1.bf16.msra.mxu0 0
    %392 = vmatprep.mubr.bf16.mxu0 0
    %393 = vmatmul.mubr.bf16.gmra.mrb[0].mxu0 %v104
    %v394 = vpop.f32.mrb[0].mxu0
    %v395 = vadd.f32 %v150, %v394
    %v396 = vpop.f32.mrb[0].mxu0
    %v397 = vadd.f32 %v154, %v396
    %v398 = vpop.f32.mrb[0].mxu0
    %v399 = vpop.f32.mrb[0].mxu0
    %400 = vdwg.mxu0
    %v401 = vtanh.pop %v354
    %v402 = vtanh.pop %v356
    %v403 = vtanh.pop %v395
    %v404 = vtanh.pop %v397
    %v405 = vpack.c.bf16 %v401, %v401
    %v406 = vpack.c.bf16 %v402, %v402
    %v407 = vpack.c.bf16 %v403, %v403
    %v408 = vpack.c.bf16 %v404, %v404
    %v409 = vld [vmem:[#allocation7] sm:$0xff]
    %v410 = vld [vmem:[#allocation7 + $0x8] sm:$0xff]
    %v411 = vld [vmem:[#allocation7 + $0x10] sm:$0xff]
    %v412 = vld [vmem:[#allocation7 + $0x18] sm:$0xff]
    %v413 = vld [vmem:[#allocation7 + $0x20] sm:$0xff]
    %v414 = vld [vmem:[#allocation7 + $0x28] sm:$0xff]
    %v415 = vld [vmem:[#allocation7 + $0x30] sm:$0xff]
    %v416 = vld [vmem:[#allocation7 + $0x38] sm:$0xff]
    %v417 = vld [vmem:[#allocation7 + $0x40] sm:$0xff]
    %v418 = vld [vmem:[#allocation7 + $0x48] sm:$0xff]
    %v419 = vld [vmem:[#allocation7 + $0x50] sm:$0xff]
    %v420 = vld [vmem:[#allocation7 + $0x58] sm:$0xff]
    %v421 = vld [vmem:[#allocation7 + $0x60] sm:$0xff]
    %v422 = vld [vmem:[#allocation7 + $0x68] sm:$0xff]
    %v423 = vld [vmem:[#allocation7 + $0x70] sm:$0xff]
    %v424 = vld [vmem:[#allocation7 + $0x78] sm:$0xff]
    %v425 = vld [vmem:[#allocation7 + $0x80] sm:$0xff]
    %v426 = vld [vmem:[#allocation7 + $0x88] sm:$0xff]
    %v427 = vld [vmem:[#allocation7 + $0x90] sm:$0xff]
    %v428 = vld [vmem:[#allocation7 + $0x98] sm:$0xff]
    %v429 = vld [vmem:[#allocation7 + $0xa0] sm:$0xff]
    %v430 = vld [vmem:[#allocation7 + $0xa8] sm:$0xff]
    %v431 = vld [vmem:[#allocation7 + $0xb0] sm:$0xff]
    %v432 = vld [vmem:[#allocation7 + $0xb8] sm:$0xff]
    %v433 = vld [vmem:[#allocation7 + $0xc0] sm:$0xff]
    %v434 = vld [vmem:[#allocation7 + $0xc8] sm:$0xff]
    %v435 = vld [vmem:[#allocation7 + $0xd0] sm:$0xff]
    %v436 = vld [vmem:[#allocation7 + $0xd8] sm:$0xff]
    %v437 = vld [vmem:[#allocation7 + $0xe0] sm:$0xff]
    %v438 = vld [vmem:[#allocation7 + $0xe8] sm:$0xff]
    %v439 = vld [vmem:[#allocation7 + $0xf0] sm:$0xff]
    %v440 = vld [vmem:[#allocation7 + $0xf8] sm:$0xff]
    %v441 = vld [vmem:[#allocation7 + $0x100] sm:$0xff]
    %v442 = vld [vmem:[#allocation7 + $0x108] sm:$0xff]
    %v443 = vld [vmem:[#allocation7 + $0x110] sm:$0xff]
    %v444 = vld [vmem:[#allocation7 + $0x118] sm:$0xff]
    %v445 = vld [vmem:[#allocation7 + $0x120] sm:$0xff]
    %v446 = vld [vmem:[#allocation7 + $0x128] sm:$0xff]
    %v447 = vld [vmem:[#allocation7 + $0x130] sm:$0xff]
    %v448 = vld [vmem:[#allocation7 + $0x138] sm:$0xff]
    %v449 = vld [vmem:[#allocation7 + $0x140] sm:$0xff]
    %v450 = vld [vmem:[#allocation7 + $0x148] sm:$0xff]
    %v451 = vld [vmem:[#allocation7 + $0x150] sm:$0xff]
    %v452 = vld [vmem:[#allocation7 + $0x158] sm:$0xff]
    %v453 = vld [vmem:[#allocation7 + $0x160] sm:$0xff]
    %v454 = vld [vmem:[#allocation7 + $0x168] sm:$0xff]
    %v455 = vld [vmem:[#allocation7 + $0x170] sm:$0xff]
    %v456 = vld [vmem:[#allocation7 + $0x178] sm:$0xff]
    %v457 = vld [vmem:[#allocation7 + $0x180] sm:$0xff]
    %v458 = vld [vmem:[#allocation7 + $0x188] sm:$0xff]
    %v459 = vld [vmem:[#allocation7 + $0x190] sm:$0xff]
    %v460 = vld [vmem:[#allocation7 + $0x198] sm:$0xff]
    %v461 = vld [vmem:[#allocation7 + $0x1a0] sm:$0xff]
    %v462 = vld [vmem:[#allocation7 + $0x1a8] sm:$0xff]
    %v463 = vld [vmem:[#allocation7 + $0x1b0] sm:$0xff]
    %v464 = vld [vmem:[#allocation7 + $0x1b8] sm:$0xff]
    %v465 = vld [vmem:[#allocation7 + $0x1c0] sm:$0xff]
    %v466 = vld [vmem:[#allocation7 + $0x1c8] sm:$0xff]
    %v467 = vld [vmem:[#allocation7 + $0x1d0] sm:$0xff]
    %v468 = vld [vmem:[#allocation7 + $0x1d8] sm:$0xff]
    %v469 = vld [vmem:[#allocation7 + $0x1e0] sm:$0xff]
    %v470 = vld [vmem:[#allocation7 + $0x1e8] sm:$0xff]
    %v471 = vld [vmem:[#allocation7 + $0x1f0] sm:$0xff]
    %v472 = vld [vmem:[#allocation7 + $0x1f8] sm:$0xff]
    %v473 = vld [vmem:[%s4] sm:$0x3]
    %v475 = vlaneseq
    %v476 = vshrl.u32 %v475, 7
    %v477 = vsub.s32 0, %v476
    %v478 = vrot.slane %v473, %v477
    %v479 = vlaneseq
    %v480 = vshrl.u32 %v479, 7
    %v481 = vsub.s32 1, %v480
    %v482 = vrot.slane %v473, %v481
    %v549 = vunpack.c.l.b16 %v409
    %v550 = vunpack.c.h.b16 %v409
    %v551 = vunpack.c.l.b16 %v410
    %v552 = vunpack.c.h.b16 %v410
    %v553 = vunpack.c.l.b16 %v411
    %v554 = vunpack.c.h.b16 %v411
    %v555 = vunpack.c.l.b16 %v412
    %v556 = vunpack.c.h.b16 %v412
    %v557 = vunpack.c.l.b16 %v413
    %v558 = vunpack.c.h.b16 %v413
    %v559 = vunpack.c.l.b16 %v414
    %v560 = vunpack.c.h.b16 %v414
    %v561 = vunpack.c.l.b16 %v415
    %v562 = vunpack.c.h.b16 %v415
    %v563 = vunpack.c.l.b16 %v416
    %v564 = vunpack.c.h.b16 %v416
    %v565 = vunpack.c.l.b16 %v417
    %v566 = vunpack.c.h.b16 %v417
    %v567 = vunpack.c.l.b16 %v418
    %v568 = vunpack.c.h.b16 %v418
    %v569 = vunpack.c.l.b16 %v419
    %v570 = vunpack.c.h.b16 %v419
    %v571 = vunpack.c.l.b16 %v420
    %v572 = vunpack.c.h.b16 %v420
    %v573 = vunpack.c.l.b16 %v421
    %v574 = vunpack.c.h.b16 %v421
    %v575 = vunpack.c.l.b16 %v422
    %v576 = vunpack.c.h.b16 %v422
    %v577 = vunpack.c.l.b16 %v423
    %v578 = vunpack.c.h.b16 %v423
    %v579 = vunpack.c.l.b16 %v424
    %v580 = vunpack.c.h.b16 %v424
    %v581 = vunpack.c.l.b16 %v425
    %v582 = vunpack.c.h.b16 %v425
    %v583 = vunpack.c.l.b16 %v426
    %v584 = vunpack.c.h.b16 %v426
    %v585 = vunpack.c.l.b16 %v427
    %v586 = vunpack.c.h.b16 %v427
    %v587 = vunpack.c.l.b16 %v428
    %v588 = vunpack.c.h.b16 %v428
    %v589 = vunpack.c.l.b16 %v429
    %v590 = vunpack.c.h.b16 %v429
    %v591 = vunpack.c.l.b16 %v430
    %v592 = vunpack.c.h.b16 %v430
    %v593 = vunpack.c.l.b16 %v431
    %v594 = vunpack.c.h.b16 %v431
    %v595 = vunpack.c.l.b16 %v432
    %v596 = vunpack.c.h.b16 %v432
    %v597 = vunpack.c.l.b16 %v433
    %v598 = vunpack.c.h.b16 %v433
    %v599 = vunpack.c.l.b16 %v434
    %v600 = vunpack.c.h.b16 %v434
    %v601 = vunpack.c.l.b16 %v435
    %v602 = vunpack.c.h.b16 %v435
    %v603 = vunpack.c.l.b16 %v436
    %v604 = vunpack.c.h.b16 %v436
    %v605 = vunpack.c.l.b16 %v437
    %v606 = vunpack.c.h.b16 %v437
    %v607 = vunpack.c.l.b16 %v438
    %v608 = vunpack.c.h.b16 %v438
    %v609 = vunpack.c.l.b16 %v439
    %v610 = vunpack.c.h.b16 %v439
    %v611 = vunpack.c.l.b16 %v440
    %v612 = vunpack.c.h.b16 %v440
    %v613 = vunpack.c.l.b16 %v441
    %v614 = vunpack.c.h.b16 %v441
    %v615 = vunpack.c.l.b16 %v442
    %v616 = vunpack.c.h.b16 %v442
    %v617 = vunpack.c.l.b16 %v443
    %v618 = vunpack.c.h.b16 %v443
    %v619 = vunpack.c.l.b16 %v444
    %v620 = vunpack.c.h.b16 %v444
    %v621 = vunpack.c.l.b16 %v445
    %v622 = vunpack.c.h.b16 %v445
    %v623 = vunpack.c.l.b16 %v446
    %v624 = vunpack.c.h.b16 %v446
    %v625 = vunpack.c.l.b16 %v447
    %v626 = vunpack.c.h.b16 %v447
    %v627 = vunpack.c.l.b16 %v448
    %v628 = vunpack.c.h.b16 %v448
    %v629 = vunpack.c.l.b16 %v449
    %v630 = vunpack.c.h.b16 %v449
    %v631 = vunpack.c.l.b16 %v450
    %v632 = vunpack.c.h.b16 %v450
    %v633 = vunpack.c.l.b16 %v451
    %v634 = vunpack.c.h.b16 %v451
    %v635 = vunpack.c.l.b16 %v452
    %v636 = vunpack.c.h.b16 %v452
    %v637 = vunpack.c.l.b16 %v453
    %v638 = vunpack.c.h.b16 %v453
    %v639 = vunpack.c.l.b16 %v454
    %v640 = vunpack.c.h.b16 %v454
    %v641 = vunpack.c.l.b16 %v455
    %v642 = vunpack.c.h.b16 %v455
    %v643 = vunpack.c.l.b16 %v456
    %v644 = vunpack.c.h.b16 %v456
    %v645 = vunpack.c.l.b16 %v457
    %v646 = vunpack.c.h.b16 %v457
    %v647 = vunpack.c.l.b16 %v458
    %v648 = vunpack.c.h.b16 %v458
    %v649 = vunpack.c.l.b16 %v459
    %v650 = vunpack.c.h.b16 %v459
    %v651 = vunpack.c.l.b16 %v460
    %v652 = vunpack.c.h.b16 %v460
    %v653 = vunpack.c.l.b16 %v461
    %v654 = vunpack.c.h.b16 %v461
    %v655 = vunpack.c.l.b16 %v462
    %v656 = vunpack.c.h.b16 %v462
    %v657 = vunpack.c.l.b16 %v463
    %v658 = vunpack.c.h.b16 %v463
    %v659 = vunpack.c.l.b16 %v464
    %v660 = vunpack.c.h.b16 %v464
    %v661 = vunpack.c.l.b16 %v465
    %v662 = vunpack.c.h.b16 %v465
    %v663 = vunpack.c.l.b16 %v466
    %v664 = vunpack.c.h.b16 %v466
    %v665 = vunpack.c.l.b16 %v467
    %v666 = vunpack.c.h.b16 %v467
    %v667 = vunpack.c.l.b16 %v468
    %v668 = vunpack.c.h.b16 %v468
    %v669 = vunpack.c.l.b16 %v469
    %v670 = vunpack.c.h.b16 %v469
    %v671 = vunpack.c.l.b16 %v470
    %v672 = vunpack.c.h.b16 %v470
    %v673 = vunpack.c.l.b16 %v471
    %v674 = vunpack.c.h.b16 %v471
    %v675 = vunpack.c.l.b16 %v472
    %v676 = vunpack.c.h.b16 %v472
    %v677 = vpack.c.b16 %v551, %v549
    %v678 = vpack.c.b16 %v552, %v550
    %v679 = vpack.c.b16 %v555, %v553
    %v680 = vpack.c.b16 %v556, %v554
    %v681 = vpack.c.b16 %v559, %v557
    %v682 = vpack.c.b16 %v560, %v558
    %v683 = vpack.c.b16 %v563, %v561
    %v684 = vpack.c.b16 %v564, %v562
    %v685 = vpack.c.b16 %v567, %v565
    %v686 = vpack.c.b16 %v568, %v566
    %v687 = vpack.c.b16 %v571, %v569
    %v688 = vpack.c.b16 %v572, %v570
    %v689 = vpack.c.b16 %v575, %v573
    %v690 = vpack.c.b16 %v576, %v574
    %v691 = vpack.c.b16 %v579, %v577
    %v692 = vpack.c.b16 %v580, %v578
    %v693 = vpack.c.b16 %v583, %v581
    %v694 = vpack.c.b16 %v584, %v582
    %v695 = vpack.c.b16 %v587, %v585
    %v696 = vpack.c.b16 %v588, %v586
    %v697 = vpack.c.b16 %v591, %v589
    %v698 = vpack.c.b16 %v592, %v590
    %v699 = vpack.c.b16 %v595, %v593
    %v700 = vpack.c.b16 %v596, %v594
    %v701 = vpack.c.b16 %v599, %v597
    %v702 = vpack.c.b16 %v600, %v598
    %v703 = vpack.c.b16 %v603, %v601
    %v704 = vpack.c.b16 %v604, %v602
    %v705 = vpack.c.b16 %v607, %v605
    %v706 = vpack.c.b16 %v608, %v606
    %v707 = vpack.c.b16 %v611, %v609
    %v708 = vpack.c.b16 %v612, %v610
    %v709 = vpack.c.b16 %v615, %v613
    %v710 = vpack.c.b16 %v616, %v614
    %v711 = vpack.c.b16 %v619, %v617
    %v712 = vpack.c.b16 %v620, %v618
    %v713 = vpack.c.b16 %v623, %v621
    %v714 = vpack.c.b16 %v624, %v622
    %v715 = vpack.c.b16 %v627, %v625
    %v716 = vpack.c.b16 %v628, %v626
    %v717 = vpack.c.b16 %v631, %v629
    %v718 = vpack.c.b16 %v632, %v630
    %v719 = vpack.c.b16 %v635, %v633
    %v720 = vpack.c.b16 %v636, %v634
    %v721 = vpack.c.b16 %v639, %v637
    %v722 = vpack.c.b16 %v640, %v638
    %v723 = vpack.c.b16 %v643, %v641
    %v724 = vpack.c.b16 %v644, %v642
    %v725 = vpack.c.b16 %v647, %v645
    %v726 = vpack.c.b16 %v648, %v646
    %v727 = vpack.c.b16 %v651, %v649
    %v728 = vpack.c.b16 %v652, %v650
    %v729 = vpack.c.b16 %v655, %v653
    %v730 = vpack.c.b16 %v656, %v654
    %v731 = vpack.c.b16 %v659, %v657
    %v732 = vpack.c.b16 %v660, %v658
    %v733 = vpack.c.b16 %v663, %v661
    %v734 = vpack.c.b16 %v664, %v662
    %v735 = vpack.c.b16 %v667, %v665
    %v736 = vpack.c.b16 %v668, %v666
    %v737 = vpack.c.b16 %v671, %v669
    %v738 = vpack.c.b16 %v672, %v670
    %v739 = vpack.c.b16 %v675, %v673
    %v740 = vpack.c.b16 %v676, %v674
    %805 = vmatprep.subr.bf16.mxu0 %v678
    %806 = vmatpush1.bf16.msra.mxu0 %v677
    %807 = vmatprep.subr.bf16.mxu0 %v680
    %808 = vmatpush1.bf16.msra.mxu0 %v679
    %809 = vmatprep.subr.bf16.mxu0 %v682
    %810 = vmatpush1.bf16.msra.mxu0 %v681
    %811 = vmatprep.subr.bf16.mxu0 %v684
    %812 = vmatpush1.bf16.msra.mxu0 %v683
    %813 = vmatprep.subr.bf16.mxu0 %v686
    %814 = vmatpush1.bf16.msra.mxu0 %v685
    %815 = vmatprep.subr.bf16.mxu0 %v688
    %816 = vmatpush1.bf16.msra.mxu0 %v687
    %817 = vmatprep.subr.bf16.mxu0 %v690
    %818 = vmatpush1.bf16.msra.mxu0 %v689
    %819 = vmatprep.subr.bf16.mxu0 %v692
    %820 = vmatpush1.bf16.msra.mxu0 %v691
    %821 = vmatprep.subr.bf16.mxu0 %v694
    %822 = vmatpush1.bf16.msra.mxu0 %v693
    %823 = vmatprep.subr.bf16.mxu0 %v696
    %824 = vmatpush1.bf16.msra.mxu0 %v695
    %825 = vmatprep.subr.bf16.mxu0 %v698
    %826 = vmatpush1.bf16.msra.mxu0 %v697
    %827 = vmatprep.subr.bf16.mxu0 %v700
    %828 = vmatpush1.bf16.msra.mxu0 %v699
    %829 = vmatprep.subr.bf16.mxu0 %v702
    %830 = vmatpush1.bf16.msra.mxu0 %v701
    %831 = vmatprep.subr.bf16.mxu0 %v704
    %832 = vmatpush1.bf16.msra.mxu0 %v703
    %833 = vmatprep.subr.bf16.mxu0 %v706
    %834 = vmatpush1.bf16.msra.mxu0 %v705
    %835 = vmatprep.subr.bf16.mxu0 %v708
    %836 = vmatpush1.bf16.msra.mxu0 %v707
    %837 = vmatprep.mubr.bf16.mxu0 %v406
    %838 = vmatmul.mubr.bf16.gmra.mrb[0].mxu0 %v405
    %v839 = vpop.f32.mrb[0].mxu0
    %v840 = vadd.f32 %v478, %v839
    %v841 = vpop.f32.mrb[0].mxu0
    %v842 = vadd.f32 %v482, %v841
    %v843 = vpop.f32.mrb[0].mxu0
    %v844 = vpop.f32.mrb[0].mxu0
    %845 = vdwg.mxu0
    %846 = vmatprep.subr.bf16.mxu0 %v710
    %847 = vmatpush1.bf16.msra.mxu0 %v709
    %848 = vmatprep.subr.bf16.mxu0 %v712
    %849 = vmatpush1.bf16.msra.mxu0 %v711
    %850 = vmatprep.subr.bf16.mxu0 %v714
    %851 = vmatpush1.bf16.msra.mxu0 %v713
    %852 = vmatprep.subr.bf16.mxu0 %v716
    %853 = vmatpush1.bf16.msra.mxu0 %v715
    %854 = vmatprep.subr.bf16.mxu0 %v718
    %855 = vmatpush1.bf16.msra.mxu0 %v717
    %856 = vmatprep.subr.bf16.mxu0 %v720
    %857 = vmatpush1.bf16.msra.mxu0 %v719
    %858 = vmatprep.subr.bf16.mxu0 %v722
    %859 = vmatpush1.bf16.msra.mxu0 %v721
    %860 = vmatprep.subr.bf16.mxu0 %v724
    %861 = vmatpush1.bf16.msra.mxu0 %v723
    %862 = vmatprep.subr.bf16.mxu0 %v726
    %863 = vmatpush1.bf16.msra.mxu0 %v725
    %864 = vmatprep.subr.bf16.mxu0 %v728
    %865 = vmatpush1.bf16.msra.mxu0 %v727
    %866 = vmatprep.subr.bf16.mxu0 %v730
    %867 = vmatpush1.bf16.msra.mxu0 %v729
    %868 = vmatprep.subr.bf16.mxu0 %v732
    %869 = vmatpush1.bf16.msra.mxu0 %v731
    %870 = vmatprep.subr.bf16.mxu0 %v734
    %871 = vmatpush1.bf16.msra.mxu0 %v733
    %872 = vmatprep.subr.bf16.mxu0 %v736
    %873 = vmatpush1.bf16.msra.mxu0 %v735
    %874 = vmatprep.subr.bf16.mxu0 %v738
    %875 = vmatpush1.bf16.msra.mxu0 %v737
    %876 = vmatprep.subr.bf16.mxu0 %v740
    %877 = vmatpush1.bf16.msra.mxu0 %v739
    %878 = vmatprep.mubr.bf16.mxu0 %v408
    %879 = vmatmul.mubr.bf16.gmra.mrb[0].mxu0 %v407
    %v880 = vpop.f32.mrb[0].mxu0
    %v881 = vadd.f32 %v840, %v880
    %v882 = vpop.f32.mrb[0].mxu0
    %v883 = vadd.f32 %v842, %v882
    %v884 = vpop.f32.mrb[0].mxu0
    %v885 = vpop.f32.mrb[0].mxu0
    %886 = vdwg.mxu0
    %v887 = vtanh.pop %v881
    %v888 = vtanh.pop %v883
    %v889 = vpack.c.bf16 %v887, %v887
    %v890 = vpack.c.bf16 %v888, %v888
    %v891 = vld [vmem:[#allocation8] sm:$0xff]
    %v892 = vld [vmem:[#allocation8 + $0x8] sm:$0xff]
    %v893 = vld [vmem:[#allocation8 + $0x10] sm:$0xff]
    %v894 = vld [vmem:[#allocation8 + $0x18] sm:$0xff]
    %v895 = vld [vmem:[#allocation8 + $0x20] sm:$0xff]
    %v896 = vld [vmem:[#allocation8 + $0x28] sm:$0xff]
    %v897 = vld [vmem:[#allocation8 + $0x30] sm:$0xff]
    %v898 = vld [vmem:[#allocation8 + $0x38] sm:$0xff]
    %v899 = vld [vmem:[#allocation8 + $0x40] sm:$0xff]
    %v900 = vld [vmem:[#allocation8 + $0x48] sm:$0xff]
    %v901 = vld [vmem:[#allocation8 + $0x50] sm:$0xff]
    %v902 = vld [vmem:[#allocation8 + $0x58] sm:$0xff]
    %v903 = vld [vmem:[#allocation8 + $0x60] sm:$0xff]
    %v904 = vld [vmem:[#allocation8 + $0x68] sm:$0xff]
    %v905 = vld [vmem:[#allocation8 + $0x70] sm:$0xff]
    %v906 = vld [vmem:[#allocation8 + $0x78] sm:$0xff]
    %v907 = vld [vmem:[#allocation8 + $0x80] sm:$0xff]
    %v908 = vld [vmem:[#allocation8 + $0x88] sm:$0xff]
    %v909 = vld [vmem:[#allocation8 + $0x90] sm:$0xff]
    %v910 = vld [vmem:[#allocation8 + $0x98] sm:$0xff]
    %v911 = vld [vmem:[#allocation8 + $0xa0] sm:$0xff]
    %v912 = vld [vmem:[#allocation8 + $0xa8] sm:$0xff]
    %v913 = vld [vmem:[#allocation8 + $0xb0] sm:$0xff]
    %v914 = vld [vmem:[#allocation8 + $0xb8] sm:$0xff]
    %v915 = vld [vmem:[#allocation8 + $0xc0] sm:$0xff]
    %v916 = vld [vmem:[#allocation8 + $0xc8] sm:$0xff]
    %v917 = vld [vmem:[#allocation8 + $0xd0] sm:$0xff]
    %v918 = vld [vmem:[#allocation8 + $0xd8] sm:$0xff]
    %v919 = vld [vmem:[#allocation8 + $0xe0] sm:$0xff]
    %v920 = vld [vmem:[#allocation8 + $0xe8] sm:$0xff]
    %v921 = vld [vmem:[#allocation8 + $0xf0] sm:$0xff]
    %v922 = vld [vmem:[#allocation8 + $0xf8] sm:$0xff]
    %v923 = vld [vmem:[%s6] sm:$0x3]
    %v925 = vlaneseq
    %v926 = vshrl.u32 %v925, 7
    %v927 = vsub.s32 0, %v926
    %v928 = vrot.slane %v923, %v927
    %v929 = vlaneseq
    %v930 = vshrl.u32 %v929, 7
    %v931 = vsub.s32 1, %v930
    %v932 = vrot.slane %v923, %v931
    %v967 = vunpack.c.l.b16 %v891
    %v968 = vunpack.c.h.b16 %v891
    %v969 = vunpack.c.l.b16 %v892
    %v970 = vunpack.c.h.b16 %v892
    %v971 = vunpack.c.l.b16 %v893
    %v972 = vunpack.c.h.b16 %v893
    %v973 = vunpack.c.l.b16 %v894
    %v974 = vunpack.c.h.b16 %v894
    %v975 = vunpack.c.l.b16 %v895
    %v976 = vunpack.c.h.b16 %v895
    %v977 = vunpack.c.l.b16 %v896
    %v978 = vunpack.c.h.b16 %v896
    %v979 = vunpack.c.l.b16 %v897
    %v980 = vunpack.c.h.b16 %v897
    %v981 = vunpack.c.l.b16 %v898
    %v982 = vunpack.c.h.b16 %v898
    %v983 = vunpack.c.l.b16 %v899
    %v984 = vunpack.c.h.b16 %v899
    %v985 = vunpack.c.l.b16 %v900
    %v986 = vunpack.c.h.b16 %v900
    %v987 = vunpack.c.l.b16 %v901
    %v988 = vunpack.c.h.b16 %v901
    %v989 = vunpack.c.l.b16 %v902
    %v990 = vunpack.c.h.b16 %v902
    %v991 = vunpack.c.l.b16 %v903
    %v992 = vunpack.c.h.b16 %v903
    %v993 = vunpack.c.l.b16 %v904
    %v994 = vunpack.c.h.b16 %v904
    %v995 = vunpack.c.l.b16 %v905
    %v996 = vunpack.c.h.b16 %v905
    %v997 = vunpack.c.l.b16 %v906
    %v998 = vunpack.c.h.b16 %v906
    %v999 = vunpack.c.l.b16 %v907
    %v1000 = vunpack.c.h.b16 %v907
    %v1001 = vunpack.c.l.b16 %v908
    %v1002 = vunpack.c.h.b16 %v908
    %v1003 = vunpack.c.l.b16 %v909
    %v1004 = vunpack.c.h.b16 %v909
    %v1005 = vunpack.c.l.b16 %v910
    %v1006 = vunpack.c.h.b16 %v910
    %v1007 = vunpack.c.l.b16 %v911
    %v1008 = vunpack.c.h.b16 %v911
    %v1009 = vunpack.c.l.b16 %v912
    %v1010 = vunpack.c.h.b16 %v912
    %v1011 = vunpack.c.l.b16 %v913
    %v1012 = vunpack.c.h.b16 %v913
    %v1013 = vunpack.c.l.b16 %v914
    %v1014 = vunpack.c.h.b16 %v914
    %v1015 = vunpack.c.l.b16 %v915
    %v1016 = vunpack.c.h.b16 %v915
    %v1017 = vunpack.c.l.b16 %v916
    %v1018 = vunpack.c.h.b16 %v916
    %v1019 = vunpack.c.l.b16 %v917
    %v1020 = vunpack.c.h.b16 %v917
    %v1021 = vunpack.c.l.b16 %v918
    %v1022 = vunpack.c.h.b16 %v918
    %v1023 = vunpack.c.l.b16 %v919
    %v1024 = vunpack.c.h.b16 %v919
    %v1025 = vunpack.c.l.b16 %v920
    %v1026 = vunpack.c.h.b16 %v920
    %v1027 = vunpack.c.l.b16 %v921
    %v1028 = vunpack.c.h.b16 %v921
    %v1029 = vunpack.c.l.b16 %v922
    %v1030 = vunpack.c.h.b16 %v922
    %v1031 = vpack.c.b16 %v969, %v967
    %v1032 = vpack.c.b16 %v970, %v968
    %v1033 = vpack.c.b16 %v973, %v971
    %v1034 = vpack.c.b16 %v974, %v972
    %v1035 = vpack.c.b16 %v977, %v975
    %v1036 = vpack.c.b16 %v978, %v976
    %v1037 = vpack.c.b16 %v981, %v979
    %v1038 = vpack.c.b16 %v982, %v980
    %v1039 = vpack.c.b16 %v985, %v983
    %v1040 = vpack.c.b16 %v986, %v984
    %v1041 = vpack.c.b16 %v989, %v987
    %v1042 = vpack.c.b16 %v990, %v988
    %v1043 = vpack.c.b16 %v993, %v991
    %v1044 = vpack.c.b16 %v994, %v992
    %v1045 = vpack.c.b16 %v997, %v995
    %v1046 = vpack.c.b16 %v998, %v996
    %v1047 = vpack.c.b16 %v1001, %v999
    %v1048 = vpack.c.b16 %v1002, %v1000
    %v1049 = vpack.c.b16 %v1005, %v1003
    %v1050 = vpack.c.b16 %v1006, %v1004
    %v1051 = vpack.c.b16 %v1009, %v1007
    %v1052 = vpack.c.b16 %v1010, %v1008
    %v1053 = vpack.c.b16 %v1013, %v1011
    %v1054 = vpack.c.b16 %v1014, %v1012
    %v1055 = vpack.c.b16 %v1017, %v1015
    %v1056 = vpack.c.b16 %v1018, %v1016
    %v1057 = vpack.c.b16 %v1021, %v1019
    %v1058 = vpack.c.b16 %v1022, %v1020
    %v1059 = vpack.c.b16 %v1025, %v1023
    %v1060 = vpack.c.b16 %v1026, %v1024
    %v1061 = vpack.c.b16 %v1029, %v1027
    %v1062 = vpack.c.b16 %v1030, %v1028
    %1095 = vmatprep.subr.bf16.mxu0 %v1032
    %1096 = vmatpush1.bf16.msra.mxu0 %v1031
    %1097 = vmatprep.subr.bf16.mxu0 %v1034
    %1098 = vmatpush1.bf16.msra.mxu0 %v1033
    %1099 = vmatprep.subr.bf16.mxu0 %v1036
    %1100 = vmatpush1.bf16.msra.mxu0 %v1035
    %1101 = vmatprep.subr.bf16.mxu0 %v1038
    %1102 = vmatpush1.bf16.msra.mxu0 %v1037
    %1103 = vmatprep.subr.bf16.mxu0 %v1040
    %1104 = vmatpush1.bf16.msra.mxu0 %v1039
    %1105 = vmatprep.subr.bf16.mxu0 %v1042
    %1106 = vmatpush1.bf16.msra.mxu0 %v1041
    %1107 = vmatprep.subr.bf16.mxu0 %v1044
    %1108 = vmatpush1.bf16.msra.mxu0 %v1043
    %1109 = vmatprep.subr.bf16.mxu0 %v1046
    %1110 = vmatpush1.bf16.msra.mxu0 %v1045
    %1111 = vmatprep.subr.bf16.mxu0 %v1048
    %1112 = vmatpush1.bf16.msra.mxu0 %v1047
    %1113 = vmatprep.subr.bf16.mxu0 %v1050
    %1114 = vmatpush1.bf16.msra.mxu0 %v1049
    %1115 = vmatprep.subr.bf16.mxu0 %v1052
    %1116 = vmatpush1.bf16.msra.mxu0 %v1051
    %1117 = vmatprep.subr.bf16.mxu0 %v1054
    %1118 = vmatpush1.bf16.msra.mxu0 %v1053
    %1119 = vmatprep.subr.bf16.mxu0 %v1056
    %1120 = vmatpush1.bf16.msra.mxu0 %v1055
    %1121 = vmatprep.subr.bf16.mxu0 %v1058
    %1122 = vmatpush1.bf16.msra.mxu0 %v1057
    %1123 = vmatprep.subr.bf16.mxu0 %v1060
    %1124 = vmatpush1.bf16.msra.mxu0 %v1059
    %1125 = vmatprep.subr.bf16.mxu0 %v1062
    %1126 = vmatpush1.bf16.msra.mxu0 %v1061
    %1127 = vmatprep.mubr.bf16.mxu0 %v890
    %1128 = vmatmul.mubr.bf16.gmra.mrb[0].mxu0 %v889
    %v1129 = vpop.f32.mrb[0].mxu0
    %v1130 = vadd.f32 %v928, %v1129
    %v1131 = vpop.f32.mrb[0].mxu0
    %v1132 = vadd.f32 %v932, %v1131
    %v1133 = vpop.f32.mrb[0].mxu0
    %v1134 = vpop.f32.mrb[0].mxu0
    %1135 = vdwg.mxu0
    %v1136 = vtanh.pop %v1130
    %v1137 = vtanh.pop %v1132
    %v1138 = vpack.c.bf16 %v1136, %v1136
    %v1139 = vpack.c.bf16 %v1137, %v1137
    %v1140 = vld [vmem:[#allocation10] sm:$0xff]
    %v1141 = vld [vmem:[#allocation10 + $0x8] sm:$0xff]
    %v1142 = vld [vmem:[#allocation10 + $0x10] sm:$0xff]
    %v1143 = vld [vmem:[#allocation10 + $0x18] sm:$0xff]
    %v1144 = vld [vmem:[#allocation10 + $0x20] sm:$0xff]
    %v1145 = vld [vmem:[#allocation10 + $0x28] sm:$0xff]
    %v1146 = vld [vmem:[#allocation10 + $0x30] sm:$0xff]
    %v1147 = vld [vmem:[#allocation10 + $0x38] sm:$0xff]
    %v1148 = vld [vmem:[#allocation10 + $0x40] sm:$0xff]
    %v1149 = vld [vmem:[#allocation10 + $0x48] sm:$0xff]
    %v1150 = vld [vmem:[#allocation10 + $0x50] sm:$0xff]
    %v1151 = vld [vmem:[#allocation10 + $0x58] sm:$0xff]
    %v1152 = vld [vmem:[#allocation10 + $0x60] sm:$0xff]
    %v1153 = vld [vmem:[#allocation10 + $0x68] sm:$0xff]
    %v1154 = vld [vmem:[#allocation10 + $0x70] sm:$0xff]
    %v1155 = vld [vmem:[#allocation10 + $0x78] sm:$0xff]
    %v1156 = vld [vmem:[#allocation10 + $0x80] sm:$0xff]
    %v1157 = vld [vmem:[#allocation10 + $0x88] sm:$0xff]
    %v1158 = vld [vmem:[#allocation10 + $0x90] sm:$0xff]
    %v1159 = vld [vmem:[#allocation10 + $0x98] sm:$0xff]
    %v1160 = vld [vmem:[#allocation10 + $0xa0] sm:$0xff]
    %v1161 = vld [vmem:[#allocation10 + $0xa8] sm:$0xff]
    %v1162 = vld [vmem:[#allocation10 + $0xb0] sm:$0xff]
    %v1163 = vld [vmem:[#allocation10 + $0xb8] sm:$0xff]
    %v1164 = vld [vmem:[#allocation10 + $0xc0] sm:$0xff]
    %v1165 = vld [vmem:[#allocation10 + $0xc8] sm:$0xff]
    %v1166 = vld [vmem:[#allocation10 + $0xd0] sm:$0xff]
    %v1167 = vld [vmem:[#allocation10 + $0xd8] sm:$0xff]
    %v1168 = vld [vmem:[#allocation10 + $0xe0] sm:$0xff]
    %v1169 = vld [vmem:[#allocation10 + $0xe8] sm:$0xff]
    %v1170 = vld [vmem:[#allocation10 + $0xf0] sm:$0xff]
    %v1171 = vld [vmem:[#allocation10 + $0xf8] sm:$0xff]
    %v1172 = vld [vmem:[%s8] sm:$0x3]
    %v1174 = vlaneseq
    %v1175 = vshrl.u32 %v1174, 7
    %v1176 = vsub.s32 0, %v1175
    %v1177 = vrot.slane %v1172, %v1176
    %v1178 = vlaneseq
    %v1179 = vshrl.u32 %v1178, 7
    %v1180 = vsub.s32 1, %v1179
    %v1181 = vrot.slane %v1172, %v1180
    %v1216 = vunpack.c.l.b16 %v1140
    %v1217 = vunpack.c.h.b16 %v1140
    %v1218 = vunpack.c.l.b16 %v1141
    %v1219 = vunpack.c.h.b16 %v1141
    %v1220 = vunpack.c.l.b16 %v1142
    %v1221 = vunpack.c.h.b16 %v1142
    %v1222 = vunpack.c.l.b16 %v1143
    %v1223 = vunpack.c.h.b16 %v1143
    %v1224 = vunpack.c.l.b16 %v1144
    %v1225 = vunpack.c.h.b16 %v1144
    %v1226 = vunpack.c.l.b16 %v1145
    %v1227 = vunpack.c.h.b16 %v1145
    %v1228 = vunpack.c.l.b16 %v1146
    %v1229 = vunpack.c.h.b16 %v1146
    %v1230 = vunpack.c.l.b16 %v1147
    %v1231 = vunpack.c.h.b16 %v1147
    %v1232 = vunpack.c.l.b16 %v1148
    %v1233 = vunpack.c.h.b16 %v1148
    %v1234 = vunpack.c.l.b16 %v1149
    %v1235 = vunpack.c.h.b16 %v1149
    %v1236 = vunpack.c.l.b16 %v1150
    %v1237 = vunpack.c.h.b16 %v1150
    %v1238 = vunpack.c.l.b16 %v1151
    %v1239 = vunpack.c.h.b16 %v1151
    %v1240 = vunpack.c.l.b16 %v1152
    %v1241 = vunpack.c.h.b16 %v1152
    %v1242 = vunpack.c.l.b16 %v1153
    %v1243 = vunpack.c.h.b16 %v1153
    %v1244 = vunpack.c.l.b16 %v1154
    %v1245 = vunpack.c.h.b16 %v1154
    %v1246 = vunpack.c.l.b16 %v1155
    %v1247 = vunpack.c.h.b16 %v1155
    %v1248 = vunpack.c.l.b16 %v1156
    %v1249 = vunpack.c.h.b16 %v1156
    %v1250 = vunpack.c.l.b16 %v1157
    %v1251 = vunpack.c.h.b16 %v1157
    %v1252 = vunpack.c.l.b16 %v1158
    %v1253 = vunpack.c.h.b16 %v1158
    %v1254 = vunpack.c.l.b16 %v1159
    %v1255 = vunpack.c.h.b16 %v1159
    %v1256 = vunpack.c.l.b16 %v1160
    %v1257 = vunpack.c.h.b16 %v1160
    %v1258 = vunpack.c.l.b16 %v1161
    %v1259 = vunpack.c.h.b16 %v1161
    %v1260 = vunpack.c.l.b16 %v1162
    %v1261 = vunpack.c.h.b16 %v1162
    %v1262 = vunpack.c.l.b16 %v1163
    %v1263 = vunpack.c.h.b16 %v1163
    %v1264 = vunpack.c.l.b16 %v1164
    %v1265 = vunpack.c.h.b16 %v1164
    %v1266 = vunpack.c.l.b16 %v1165
    %v1267 = vunpack.c.h.b16 %v1165
    %v1268 = vunpack.c.l.b16 %v1166
    %v1269 = vunpack.c.h.b16 %v1166
    %v1270 = vunpack.c.l.b16 %v1167
    %v1271 = vunpack.c.h.b16 %v1167
    %v1272 = vunpack.c.l.b16 %v1168
    %v1273 = vunpack.c.h.b16 %v1168
    %v1274 = vunpack.c.l.b16 %v1169
    %v1275 = vunpack.c.h.b16 %v1169
    %v1276 = vunpack.c.l.b16 %v1170
    %v1277 = vunpack.c.h.b16 %v1170
    %v1278 = vunpack.c.l.b16 %v1171
    %v1279 = vunpack.c.h.b16 %v1171
    %v1280 = vpack.c.b16 %v1218, %v1216
    %v1281 = vpack.c.b16 %v1219, %v1217
    %v1282 = vpack.c.b16 %v1222, %v1220
    %v1283 = vpack.c.b16 %v1223, %v1221
    %v1284 = vpack.c.b16 %v1226, %v1224
    %v1285 = vpack.c.b16 %v1227, %v1225
    %v1286 = vpack.c.b16 %v1230, %v1228
    %v1287 = vpack.c.b16 %v1231, %v1229
    %v1288 = vpack.c.b16 %v1234, %v1232
    %v1289 = vpack.c.b16 %v1235, %v1233
    %v1290 = vpack.c.b16 %v1238, %v1236
    %v1291 = vpack.c.b16 %v1239, %v1237
    %v1292 = vpack.c.b16 %v1242, %v1240
    %v1293 = vpack.c.b16 %v1243, %v1241
    %v1294 = vpack.c.b16 %v1246, %v1244
    %v1295 = vpack.c.b16 %v1247, %v1245
    %v1296 = vpack.c.b16 %v1250, %v1248
    %v1297 = vpack.c.b16 %v1251, %v1249
    %v1298 = vpack.c.b16 %v1254, %v1252
    %v1299 = vpack.c.b16 %v1255, %v1253
    %v1300 = vpack.c.b16 %v1258, %v1256
    %v1301 = vpack.c.b16 %v1259, %v1257
    %v1302 = vpack.c.b16 %v1262, %v1260
    %v1303 = vpack.c.b16 %v1263, %v1261
    %v1304 = vpack.c.b16 %v1266, %v1264
    %v1305 = vpack.c.b16 %v1267, %v1265
    %v1306 = vpack.c.b16 %v1270, %v1268
    %v1307 = vpack.c.b16 %v1271, %v1269
    %v1308 = vpack.c.b16 %v1274, %v1272
    %v1309 = vpack.c.b16 %v1275, %v1273
    %v1310 = vpack.c.b16 %v1278, %v1276
    %v1311 = vpack.c.b16 %v1279, %v1277
    %1344 = vmatprep.subr.bf16.mxu0 %v1281
    %1345 = vmatpush1.bf16.msra.mxu0 %v1280
    %1346 = vmatprep.subr.bf16.mxu0 %v1283
    %1347 = vmatpush1.bf16.msra.mxu0 %v1282
    %1348 = vmatprep.subr.bf16.mxu0 %v1285
    %1349 = vmatpush1.bf16.msra.mxu0 %v1284
    %1350 = vmatprep.subr.bf16.mxu0 %v1287
    %1351 = vmatpush1.bf16.msra.mxu0 %v1286
    %1352 = vmatprep.subr.bf16.mxu0 %v1289
    %1353 = vmatpush1.bf16.msra.mxu0 %v1288
    %1354 = vmatprep.subr.bf16.mxu0 %v1291
    %1355 = vmatpush1.bf16.msra.mxu0 %v1290
    %1356 = vmatprep.subr.bf16.mxu0 %v1293
    %1357 = vmatpush1.bf16.msra.mxu0 %v1292
    %1358 = vmatprep.subr.bf16.mxu0 %v1295
    %1359 = vmatpush1.bf16.msra.mxu0 %v1294
    %1360 = vmatprep.subr.bf16.mxu0 %v1297
    %1361 = vmatpush1.bf16.msra.mxu0 %v1296
    %1362 = vmatprep.subr.bf16.mxu0 %v1299
    %1363 = vmatpush1.bf16.msra.mxu0 %v1298
    %1364 = vmatprep.subr.bf16.mxu0 %v1301
    %1365 = vmatpush1.bf16.msra.mxu0 %v1300
    %1366 = vmatprep.subr.bf16.mxu0 %v1303
    %1367 = vmatpush1.bf16.msra.mxu0 %v1302
    %1368 = vmatprep.subr.bf16.mxu0 %v1305
    %1369 = vmatpush1.bf16.msra.mxu0 %v1304
    %1370 = vmatprep.subr.bf16.mxu0 %v1307
    %1371 = vmatpush1.bf16.msra.mxu0 %v1306
    %1372 = vmatprep.subr.bf16.mxu0 %v1309
    %1373 = vmatpush1.bf16.msra.mxu0 %v1308
    %1374 = vmatprep.subr.bf16.mxu0 %v1311
    %1375 = vmatpush1.bf16.msra.mxu0 %v1310
    %1376 = vmatprep.mubr.bf16.mxu0 %v1139
    %1377 = vmatmul.mubr.bf16.gmra.mrb[0].mxu0 %v1138
    %v1378 = vpop.f32.mrb[0].mxu0
    %v1379 = vadd.f32 %v1177, %v1378
    %v1380 = vpop.f32.mrb[0].mxu0
    %v1381 = vadd.f32 %v1181, %v1380
    %v1382 = vpop.f32.mrb[0].mxu0
    %v1383 = vpop.f32.mrb[0].mxu0
    %1384 = vdwg.mxu0
    %1385 = vst [vmem:[#allocation11] sm:$0xff] %v1379
    %v1386 = vand.u32 2147483647, %v1381
    %v1387 = vsub.f32 0.0, %v1386
    %v1388 = vmul.f32 %v1387, 1.442695
    %v1389 = vpow.pop %v1388
    %v1390 = vadd.f32 %v1389, 1.0
    %v1391 = vlog2.pop %v1390
    %v1392 = vmul.f32 %v1391, 0.6931472
    %v1393 = vmul.f32 -0.5, %v1389
    %v1394 = vadd.f32 %v1393, 1.0
    %v1395 = vmul.f32 %v1394, %v1389
    %v1396 = vand.u32 2147483647, %v1389
    %vm1397 = vcmp.lt.f32.partialorder %v1396, 0.0004427343
    %v1398 = vsel %vm1397, %v1395, %v1392
    %v1399 = vmax.f32 %v1381, 0.0
    %v1400 = vadd.f32 %v1398, %v1399
    %1401 = vst [vmem:[#allocation12] sm:$0xff] %v1400
    // Predicated region
    $region58: #{tpu_custom_call.1} parent=1 // pred_check
      _
    $region59: #{tpu_custom_call.1} parent=1 // pred_check_branch
      %1403 = sbr.rel (0) target = $region61
    $region60: #{tpu_custom_call.1} parent=1 // pred_region
      %s1405 = ssub.s32 128, 128
      %1406 = vsyncadd [#allocation4], %s1405
      %s1408 = sshll.u32 [#allocation11], 4
      %s1409 = int_to_ptr.vmem [resolvable:$true] %s1408
      %1411 = dma.vmem_to_hbm [thread:$0]  %s1409, 128, %s9, [#allocation4]
    $region61: #{tpu_custom_call.1} parent=1 // pred_fallthru
      _
    // Predicated region
    $region62: #{tpu_custom_call.1} parent=1 // pred_check
      _
    $region63: #{tpu_custom_call.1} parent=1 // pred_check_branch
      %1413 = sbr.rel (0) target = $region65
    $region64: #{tpu_custom_call.1} parent=1 // pred_region
      %s1415 = ssub.s32 128, 128
      %1416 = vsyncadd [#allocation13], %s1415
      %s1418 = sshll.u32 [#allocation12], 4
      %s1419 = int_to_ptr.vmem [resolvable:$true] %s1418
      %1421 = dma.vmem_to_hbm [thread:$0]  %s1419, 128, %s10, [#allocation13]
    $region65: #{tpu_custom_call.1} parent=1 // pred_fallthru
      _
    // Predicated region
    $region66: #{tpu_custom_call.1} parent=1 // pred_check
      _
    $region67: #{tpu_custom_call.1} parent=1 // pred_check_branch
      %1423 = sbr.rel (0) target = $region69
    $region68: #{tpu_custom_call.1} parent=1 // pred_region
      %1424 = dma.done [#allocation4], 128
    $region69: #{tpu_custom_call.1} parent=1 // pred_fallthru
      _
    // Predicated region
    $region70: #{tpu_custom_call.1} parent=1 // pred_check
      _
    $region71: #{tpu_custom_call.1} parent=1 // pred_check_branch
      %1426 = sbr.rel (0) target = $region73
    $region72: #{tpu_custom_call.1} parent=1 // pred_region
      %1427 = dma.done [#allocation13], 128
    $region73: #{tpu_custom_call.1} parent=1 // pred_fallthru
      _
    %1428 = vsyncpa [#allocation3], 1
    %1429 = vsyncpa [#allocation6], 1
    %1430 = vsyncpa [#allocation9], 1
    %1431 = vsyncpa [#allocation4], 1
    %1432 = vsyncpa [#allocation13], 1

</llo_original>
